<compile_context>
chip_gen: v7x
topology: tpu7x:2x2x1
jax: 0.10.0
libtpu: 0.0.40
codegen_flags: <defaults>
</compile_context>

<pallas_src>
import jax
import jax.numpy as jnp
from jax.experimental import pallas as pl
from jax.experimental.pallas import tpu as pltpu


def _conv1x1_kernel(x_ref, w_ref, o_ref, acc_ref):
    """One grid step: acc[tn, ts] += W[tn, tk] @ X[tk, ts]; write at last k."""
    @pl.when(pl.program_id(3) == 0)
    def _init():
        acc_ref[...] = jnp.zeros_like(acc_ref)

    acc_ref[...] += jnp.dot(
        w_ref[...], x_ref[...], preferred_element_type=jnp.float32
    )

    @pl.when(pl.program_id(3) == pl.num_programs(3) - 1)
    def _finalize():
        o_ref[...] = acc_ref[...].astype(o_ref.dtype)


def _round_up(x, m):
    return (x + m - 1) // m * m


def conv1x1_pallas(x_nchw, weight_oihw, *, tile_hw=1024, tile_co=256, tile_ci=256):
    """1x1 conv, stride 1, no padding, no bias, groups=1.

    x_nchw:      (N, C_in, H, W)
    weight_oihw: (C_out, C_in, 1, 1)   (PyTorch Conv2d weight layout)
    returns:     (N, C_out, H, W)
    """
    N, C_in, H, W = x_nchw.shape
    C_out = weight_oihw.shape[0]
    HW = H * W
    dtype = x_nchw.dtype

    # Free reshapes: no transposes, no extra HBM passes.
    x3 = x_nchw.reshape(N, C_in, HW)              # (N, C_in, H*W)
    w = weight_oihw.reshape(C_out, C_in)          # (C_out, C_in)

    # --- Spatial (lane) tile: multiple of 128, as large as allowed. ---------
    ts = min(tile_hw, _round_up(HW, 128))
    HWp = _round_up(HW, ts)
    if HWp != HW:
        x3 = jnp.pad(x3, ((0, 0), (0, 0), (0, HWp - HW)))

    # --- Channel tiles: full dim when small, else pad up to a tile multiple. -
    tn = min(tile_co, C_out)
    Cop = _round_up(C_out, tn) if C_out > tn else C_out
    tk = min(tile_ci, C_in)
    Cip = _round_up(C_in, tk) if C_in > tk else C_in
    if Cip != C_in:
        # Zero-padded input channels contribute nothing to the dot product.
        x3 = jnp.pad(x3, ((0, 0), (0, Cip - C_in), (0, 0)))
        w = jnp.pad(w, ((0, 0), (0, Cip - C_in)))
    if Cop != C_out:
        w = jnp.pad(w, ((0, Cop - C_out), (0, 0)))

    grid = (N, Cop // tn, HWp // ts, Cip // tk)   # reduction (C_in) axis last

    itemsize = jnp.dtype(dtype).itemsize
    cost = pl.CostEstimate(
        flops=2 * N * HW * C_in * C_out,
        transcendentals=0,
        bytes_accessed=int(
            x3.size * itemsize + w.size * itemsize + N * Cop * HWp * itemsize
        ),
    )

    out3 = pl.pallas_call(
        _conv1x1_kernel,
        out_shape=jax.ShapeDtypeStruct((N, Cop, HWp), dtype),
        grid_spec=pltpu.PrefetchScalarGridSpec(
            num_scalar_prefetch=0,
            grid=grid,
            in_specs=[
                # X[n]: (C_in tile, spatial tile); batch dim squeezed out.
                pl.BlockSpec((None, tk, ts), lambda n, j, s, k: (n, k, s)),
                # W: (C_out tile, C_in tile).
                pl.BlockSpec((tn, tk), lambda n, j, s, k: (j, k)),
            ],
            # Output block index ignores k -> resident accumulator target.
            out_specs=pl.BlockSpec((None, tn, ts), lambda n, j, s, k: (n, j, s)),
            scratch_shapes=[pltpu.VMEM((tn, ts), jnp.float32)],
        ),
        compiler_params=pltpu.CompilerParams(
            dimension_semantics=("parallel", "parallel", "parallel", "arbitrary"),
            # Above v5e (16 MiB) / v6e (32 MiB) scoped defaults, below v7x's
            # 64 MiB physical VMEM.  Default tiles use ~6 MiB.
            vmem_limit_bytes=48 * 1024 * 1024,
        ),
        cost_estimate=cost,
    )(x3, w)

    # Slice off channel/spatial padding; reshape is free (no transpose).
    return out3[:, :C_out, :HW].reshape(N, C_out, H, W)


if __name__ == "__main__":
    key = jax.random.PRNGKey(0)
    kx, kw = jax.random.split(key)

    N, C_in, C_out, H, W = 2, 4, 8, 16, 16
    x = jax.random.normal(kx, (N, C_in, H, W), dtype=jnp.float32)
    # Shape matches nn.Conv2d(in_channels, out_channels, kernel_size=1).weight
    weight = jax.random.normal(kw, (C_out, C_in, 1, 1), dtype=jnp.float32) * 0.1

    out = conv1x1_pallas(x, weight)
    out = jax.block_until_ready(out)

    # Reference: same math as F.conv2d with a 1x1 kernel, no bias.
    ref = jnp.einsum("nchw,oc->nohw", x, weight.reshape(C_out, C_in))
    assert out.shape == (N, C_out, H, W)
    assert jnp.allclose(out, ref, atol=1e-5, rtol=1e-5)

    print("KERNEL_OK")
</pallas_src>

<mosaic_0001>
module attributes {stable_mosaic.version = 11 : i64} {
  func.func @_conv1x1_kernel(%arg0: i32, %arg1: i32, %arg2: i32, %arg3: i32, %arg4: memref<1x4x256xf32, #tpu.memory_space<vmem>>, %arg5: memref<8x4xf32, #tpu.memory_space<vmem>>, %arg6: memref<1x8x256xf32, #tpu.memory_space<vmem>>, %arg7: memref<8x256xf32, #tpu.memory_space<vmem>>) attributes {dimension_semantics = [#tpu.dimension_semantics<parallel>, #tpu.dimension_semantics<parallel>, #tpu.dimension_semantics<parallel>, #tpu.dimension_semantics<arbitrary>], iteration_bounds = array<i64: 2, 1, 1, 1>, scalar_prefetch = 0 : i64, scratch_operands = 1 : i64, tpu.core_type = #tpu.core_type<tc>, window_params = [{transform_indices = @transform_0, window_bounds = array<i64: 1, 4, 256>}, {transform_indices = @transform_1, window_bounds = array<i64: 8, 4>}, {transform_indices = @transform_2, window_bounds = array<i64: 1, 8, 256>}]} {
    %c0_i32 = arith.constant 0 : i32
    %0 = arith.cmpi eq, %arg3, %c0_i32 : i32
    %1 = arith.extui %0 : i1 to i32
    %c0_i32_0 = arith.constant 0 : i32
    %2 = arith.cmpi ne, %1, %c0_i32_0 : i32
    scf.if %2 {
      %cst_11 = arith.constant 0.000000e+00 : f32
      %13 = vector.broadcast %cst_11 : f32 to vector<8x256xf32>
      %c0_12 = arith.constant 0 : index
      %c0_13 = arith.constant 0 : index
      %14 = vector.load %arg7[%c0_12, %c0_13] : memref<8x256xf32, #tpu.memory_space<vmem>>, vector<8x256xf32>
      tpu.vector_store %arg7[%c0_12, %c0_13], %13 {strides = array<i32>} : memref<8x256xf32, #tpu.memory_space<vmem>>, vector<8x256xf32>,
    } else {
    }
    %c0 = arith.constant 0 : index
    %c0_1 = arith.constant 0 : index
    %3 = vector.load %arg7[%c0, %c0_1] : memref<8x256xf32, #tpu.memory_space<vmem>>, vector<8x256xf32>
    %c0_2 = arith.constant 0 : index
    %c0_3 = arith.constant 0 : index
    %4 = vector.load %arg5[%c0_2, %c0_3] : memref<8x4xf32, #tpu.memory_space<vmem>>, vector<8x4xf32>
    %c0_4 = arith.constant 0 : index
    %c0_5 = arith.constant 0 : index
    %c0_6 = arith.constant 0 : index
    %5 = vector.load %arg4[%c0_4, %c0_5, %c0_6] : memref<1x4x256xf32, #tpu.memory_space<vmem>>, vector<1x4x256xf32>
    %6 = vector.shape_cast %5 : vector<1x4x256xf32> to vector<4x256xf32>
    %cst = arith.constant dense<0.000000e+00> : vector<8x256xf32>
    %7 = tpu.matmul %4, %6, %cst {dimension_numbers = #tpu.dot_dimension_numbers<[1], [0], [0], [1], [0, 0, 1, 1], [], []>} : vector<8x4xf32>, vector<4x256xf32>, vector<8x256xf32> -> vector<8x256xf32>
    %8 = arith.addf %3, %7 : vector<8x256xf32>
    %c0_7 = arith.constant 0 : index
    %c0_8 = arith.constant 0 : index
    %9 = vector.load %arg7[%c0_7, %c0_8] : memref<8x256xf32, #tpu.memory_space<vmem>>, vector<8x256xf32>
    tpu.vector_store %arg7[%c0_7, %c0_8], %8 {strides = array<i32>} : memref<8x256xf32, #tpu.memory_space<vmem>>, vector<8x256xf32>,
    %c0_i32_9 = arith.constant 0 : i32
    %10 = arith.cmpi eq, %arg3, %c0_i32_9 : i32
    %11 = arith.extui %10 : i1 to i32
    %c0_i32_10 = arith.constant 0 : i32
    %12 = arith.cmpi ne, %11, %c0_i32_10 : i32
    scf.if %12 {
      %c0_11 = arith.constant 0 : index
      %c0_12 = arith.constant 0 : index
      %13 = vector.load %arg7[%c0_11, %c0_12] : memref<8x256xf32, #tpu.memory_space<vmem>>, vector<8x256xf32>
      %c0_13 = arith.constant 0 : index
      %c0_14 = arith.constant 0 : index
      %c0_15 = arith.constant 0 : index
      %14 = vector.load %arg6[%c0_13, %c0_14, %c0_15] : memref<1x8x256xf32, #tpu.memory_space<vmem>>, vector<1x8x256xf32>
      %15 = vector.shape_cast %14 : vector<1x8x256xf32> to vector<8x256xf32>
      %16 = vector.shape_cast %13 : vector<8x256xf32> to vector<1x8x256xf32>
      tpu.vector_store %arg6[%c0_13, %c0_14, %c0_15], %16 {strides = array<i32>} : memref<1x8x256xf32, #tpu.memory_space<vmem>>, vector<1x8x256xf32>,
    } else {
    }
    return
  }
  func.func @transform_0(%arg0: i32, %arg1: i32, %arg2: i32, %arg3: i32) -> (i32, i32, i32) {
    %c0_i32 = arith.constant 0 : i32
    return %arg0, %arg3, %arg2 : i32, i32, i32
  }
  func.func @transform_1(%arg0: i32, %arg1: i32, %arg2: i32, %arg3: i32) -> (i32, i32) {
    %c0_i32 = arith.constant 0 : i32
    return %arg1, %arg3 : i32, i32
  }
  func.func @transform_2(%arg0: i32, %arg1: i32, %arg2: i32, %arg3: i32) -> (i32, i32, i32) {
    %c0_i32 = arith.constant 0 : i32
    return %arg0, %arg1, %arg2 : i32, i32, i32
  }
}

</mosaic_0001>

<llo_original>
// kernel: tpu_custom_call.1
$region0: #{tpu_custom_call.1}
  #allocation0 [shape = 'u32[]', space=smem, size = 0x4, offset = 0x4, fixed_abs, tag = 'smem constant byte address 0x4 - core index']
  #allocation1 [shape = 'u32[144,128]{1,0:T(1,128)}', space=vmem, size = 0x12000, scoped, tag = 'internal scratch']
  #allocation2 [shape = 'f32[8,256]{1,0:T(8,128)}', space=vmem, size = 0x2000, scoped, tag = 'scratch operand']
  %s0 = inlined_call_operand.hbm [shape: f32[2,4,256], index: 0, kind: input, shape index: {}]
  %s1 = inlined_call_operand.vmem [shape: f32[8,4], index: 1, kind: input, shape index: {}]
  %s2 = inlined_call_operand.hbm [shape: f32[2,8,256], index: 2, kind: output, shape index: {}]
  %s3 = sld [smem:[#allocation0]]
  $region53: #{tpu_custom_call.1} parent=0
    _
  %s5 = ssub.s32 1, %s3
  %s6 = scalar_select 0, %s5, %s3
  $region1: #{tpu_custom_call.1} parent=0
    #allocation3 [shape = 'u8[8192]{0}', space=vmem, size = 0x2000, scoped, tag = 'input window, operand 0']
    #allocation4 [shape = 's32[2]{0}', space=sflag, size = 0x8, scoped, tag = 'scoped memory for tpu_custom_call.1']
    #allocation5 [shape = 's32[2]{0}', space=sflag, size = 0x8, scoped, tag = 'scoped memory for tpu_custom_call.1']
    #allocation6 [shape = 'u8[16384]{0}', space=vmem, size = 0x4000, scoped, tag = 'output window, operand 0']
    %7 = vsyncpa [#allocation4], 0
    %s8 = scalar_lea.sflag [#allocation4], 1
    %9 = vsyncpa %s8, 0
    %10 = vsyncpa [#allocation5], 0
    %s11 = scalar_lea.sflag [#allocation5], 1
    %12 = vsyncpa %s11, 0
    loop: start=0, step=1, limit=4
    $region2: #{tpu_custom_call.1} parent=1 // loop_pre_header
      _
    $region3: #{tpu_custom_call.1} parent=1 // loop_header
      %s14 = sphi 0, %s18
      %p15 = scmp.ge.s32.totalorder %s14, 4
      %s21 = sphi 0, %s47
      %s22 = sphi 0, %s43
      %s23 = sphi 0, %s39
      %s24 = sphi 0, %s35
      %s25 = sphi 0, %s21
      %s26 = sphi 0, %s22
      %s27 = sphi 0, %s23
      %s28 = sphi 0, %s24
      %s29 = sphi 0, %s25
      %s30 = sphi 0, %s26
      %s31 = sphi 0, %s27
      %s32 = sphi 0, %s28
      %s54 = sphi 0, %s56
      %s57 = sphi 0, %s54
      %s58 = sphi 0, %s57
      %s74 = sphi 0, %s58
      %s82 = sphi 0, %s84
      %s85 = sphi 0, %s82
      %s86 = sphi 0, %s85
      %s102 = sphi 0, %s86
      %s112 = sphi 0, %s114
      %s115 = sphi 0, %s112
      %s116 = sphi 0, %s115
      %s132 = sphi 0, %s116
    $region4: #{tpu_custom_call.1} parent=1 // loop_header_branch
      %17 = sbr.rel (%p15) target = $region8
    $region5: #{tpu_custom_call.1} parent=1 // loop_body
      %s19 = ssub.s32 %s14, 1
      %s20 = ssub.s32 %s14, 2
      %s33 = sadd.s32 1, %s24
      %p34 = scmp.ge.s32.totalorder %s33, 1
      %s35 = scalar_select %p34, 0, %s33
      %s36 = sadd.s32 1, %s23
      %s37 = scalar_select %p34, %s36, %s23
      %p38 = scmp.ge.s32.totalorder %s37, 1
      %s39 = scalar_select %p38, 0, %s37
      %s40 = sadd.s32 1, %s22
      %s41 = scalar_select %p38, %s40, %s22
      %p42 = scmp.ge.s32.totalorder %s41, 1
      %s43 = scalar_select %p42, 0, %s41
      %s44 = sadd.s32 1, %s21
      %s45 = scalar_select %p42, %s44, %s21
      %p46 = scmp.ge.s32.totalorder %s45, 2
      %s47 = scalar_select %p46, 0, %s45
      %s48 = ssub.s32 %s21, %s47
      %s49 = ssub.s32 %s24, %s35
      %s50 = sor.u32 %s48, %s49
      %s51 = ssub.s32 %s23, %s39
      %s52 = sor.u32 %s50, %s51
      %p53 = scmp.eq.s32.totalorder %s52, 0
      %s55 = sadd.s32 %s54, 1
      %s56 = scalar_select %p53, %s54, %s55
      %p59 = pneg %p53
      %p60 = scmp.eq.s32.totalorder %s14, 1
      %p61 = por %p59, %p60
      %p62 = scmp.ne.s32.totalorder %s54, %s57
      %p63 = scmp.eq.s32.totalorder %s14, 0
      %p64 = por %p62, %p63
      %p65 = scmp.ne.s32.totalorder %s54, %s57
      %p66 = scmp.eq.s32.totalorder %s19, 1
      %p67 = por %p65, %p66
      %p68 = scmp.ne.s32.totalorder %s57, %s58
      %p69 = scmp.eq.s32.totalorder %s19, 0
      %p70 = por %p68, %p69
      %p71 = scmp.ne.s32.totalorder %s57, %s58
      %p72 = scmp.eq.s32.totalorder %s20, 1
      %p73 = por %p71, %p72
      %p75 = scmp.ne.s32.totalorder %s58, %s74
      %p76 = scmp.eq.s32.totalorder %s20, 0
      %p77 = por %p75, %p76
      %s78 = ssub.s32 %s22, %s43
      %s79 = ssub.s32 %s24, %s35
      %s80 = sor.u32 %s78, %s79
      %p81 = scmp.eq.s32.totalorder %s80, 0
      %s83 = sadd.s32 %s82, 1
      %s84 = scalar_select %p81, %s82, %s83
      %p87 = pneg %p81
      %p88 = scmp.eq.s32.totalorder %s14, 1
      %p89 = por %p87, %p88
      %p90 = scmp.ne.s32.totalorder %s82, %s85
      %p91 = scmp.eq.s32.totalorder %s14, 0
      %p92 = por %p90, %p91
      %p93 = scmp.ne.s32.totalorder %s82, %s85
      %p94 = scmp.eq.s32.totalorder %s19, 1
      %p95 = por %p93, %p94
      %p96 = scmp.ne.s32.totalorder %s85, %s86
      %p97 = scmp.eq.s32.totalorder %s19, 0
      %p98 = por %p96, %p97
      %p99 = scmp.ne.s32.totalorder %s85, %s86
      %p100 = scmp.eq.s32.totalorder %s20, 1
      %p101 = por %p99, %p100
      %p103 = scmp.ne.s32.totalorder %s86, %s102
      %p104 = scmp.eq.s32.totalorder %s20, 0
      %p105 = por %p103, %p104
      %s106 = ssub.s32 %s21, %s47
      %s107 = ssub.s32 %s22, %s43
      %s108 = sor.u32 %s106, %s107
      %s109 = ssub.s32 %s23, %s39
      %s110 = sor.u32 %s108, %s109
      %p111 = scmp.eq.s32.totalorder %s110, 0
      %s113 = sadd.s32 %s112, 1
      %s114 = scalar_select %p111, %s112, %s113
      %p117 = pneg %p111
      %p118 = scmp.eq.s32.totalorder %s14, 1
      %p119 = por %p117, %p118
      %p120 = scmp.ne.s32.totalorder %s112, %s115
      %p121 = scmp.eq.s32.totalorder %s14, 0
      %p122 = por %p120, %p121
      %p123 = scmp.ne.s32.totalorder %s112, %s115
      %p124 = scmp.eq.s32.totalorder %s19, 1
      %p125 = por %p123, %p124
      %p126 = scmp.ne.s32.totalorder %s115, %s116
      %p127 = scmp.eq.s32.totalorder %s19, 0
      %p128 = por %p126, %p127
      %p129 = scmp.ne.s32.totalorder %s115, %s116
      %p130 = scmp.eq.s32.totalorder %s20, 1
      %p131 = por %p129, %p130
      %p133 = scmp.ne.s32.totalorder %s116, %s132
      %p134 = scmp.eq.s32.totalorder %s20, 0
      %p135 = por %p133, %p134
      %p136 = scmp.le.s32.totalorder 1, %s14
      %p137 = scmp.lt.s32.totalorder %s14, 3
      %p138 = pnand %p136, %p137
      %p139 = pneg %p138
      // Predicated region
      $region9: #{tpu_custom_call.1} parent=5 // pred_check
        _
      $region10: #{tpu_custom_call.1} parent=5 // pred_check_branch
        %141 = sbr.rel (%p138) target = $region12
      $region11: #{tpu_custom_call.1} parent=5 // pred_region
        %s142 = ssub.s32 %s14, 1
        // Predicated region
        $region13: #{tpu_custom_call.1} parent=11 // pred_check
          %p143 = pneg %p98
        $region14: #{tpu_custom_call.1} parent=11 // pred_check_branch
          %145 = sbr.rel (%p143) target = $region16
        $region15: #{tpu_custom_call.1} parent=11 // pred_region
          %p146 = scmp.lt.s32.totalorder %s26, 0
          %s147 = scalar_select %p146, %s26, 0
          %p148 = scmp.lt.s32.totalorder %s28, 0
          %s149 = scalar_select %p148, %s28, 0
          %s150 = sadd.s32 %s149, %s147
          %s151 = smul.addr %s150, 8
          %s152 = scalar_lea.vmem %s1, %s151
        $region16: #{tpu_custom_call.1} parent=11 // pred_fallthru
          _
      $region12: #{tpu_custom_call.1} parent=5 // pred_fallthru
        _
      %p153 = scmp.lt.s32.totalorder %s14, 2
      // Predicated region
      $region17: #{tpu_custom_call.1} parent=5 // pred_check
        %p154 = pneg %p153
      $region18: #{tpu_custom_call.1} parent=5 // pred_check_branch
        %156 = sbr.rel (%p154) target = $region20
      $region19: #{tpu_custom_call.1} parent=5 // pred_region
        // Predicated region
        $region21: #{tpu_custom_call.1} parent=19 // pred_check
          %p157 = pneg %p64
        $region22: #{tpu_custom_call.1} parent=19 // pred_check_branch
          %159 = sbr.rel (%p157) target = $region24
        $region23: #{tpu_custom_call.1} parent=19 // pred_region
          %s160 = sand.u32 %s54, 1
          %s161 = scalar_lea.sflag [#allocation4], %s160
          %s162 = sand.u32 %s54, 1
          %s163 = smul.addr %s162, 8
          %s164 = scalar_lea.vmem [#allocation3], %s163
          %s165 = smul.u32 2, %s23
          %s167 = ssub.s32 128, 128
          %168 = vsyncadd %s161, %s167
          %s169 = smul.addr %s24, 2
          %s170 = sadd.s32 %s165, %s169
          %s171 = smul.addr %s21, 2
          %s172 = sadd.s32 %s170, %s171
          %s173 = smul.addr %s172, 64
          %s174 = scalar_lea.hbm %s0, %s173
          %s176 = sshll.u32 %s164, 4
          %s177 = int_to_ptr.vmem [resolvable:$true] %s176
          %179 = dma.hbm_to_vmem [thread:$0]  %s174, 128, %s177, %s161
        $region24: #{tpu_custom_call.1} parent=19 // pred_fallthru
          _
      $region20: #{tpu_custom_call.1} parent=5 // pred_fallthru
        _
      %p180 = scmp.le.s32.totalorder 1, %s14
      %p181 = scmp.lt.s32.totalorder %s14, 3
      %p182 = pnand %p180, %p181
      %p183 = pneg %p182
      // Predicated region
      $region25: #{tpu_custom_call.1} parent=5 // pred_check
        _
      $region26: #{tpu_custom_call.1} parent=5 // pred_check_branch
        %185 = sbr.rel (%p182) target = $region28
      $region27: #{tpu_custom_call.1} parent=5 // pred_region
        %s186 = ssub.s32 %s14, 1
        %s187 = sand.u32 %s57, 1
        %s188 = scalar_lea.sflag [#allocation4], %s187
        %s189 = sand.u32 %s57, 1
        %s190 = smul.addr %s189, 8
        %s191 = scalar_lea.vmem [#allocation3], %s190
        // Predicated region
        $region29: #{tpu_custom_call.1} parent=27 // pred_check
          %p192 = pneg %p70
        $region30: #{tpu_custom_call.1} parent=27 // pred_check_branch
          %194 = sbr.rel (%p192) target = $region32
        $region31: #{tpu_custom_call.1} parent=27 // pred_region
          %195 = dma.done %s188, 128
        $region32: #{tpu_custom_call.1} parent=27 // pred_fallthru
          _
        %s196 = sand.u32 %s57, 1
        %s197 = scalar_lea.sflag [#allocation4], %s196
        %s198 = sand.u32 %s57, 1
        %s199 = smul.addr %s198, 8
        %s200 = scalar_lea.vmem [#allocation3], %s199
        %p201 = pneg %p70
        %p202 = pneg %p67
        %p203 = scmp.lt.s32.totalorder %s26, 0
        %s204 = scalar_select %p203, %s26, 0
        %p205 = scmp.lt.s32.totalorder %s28, 0
        %s206 = scalar_select %p205, %s28, 0
        %s207 = sadd.s32 %s206, %s204
        %s208 = smul.addr %s207, 8
        %s209 = scalar_lea.vmem %s1, %s208
        %p210 = pneg %p98
        %p211 = pneg %p95
        %p212 = pneg %p128
        %p213 = pneg %p125
        %s214 = sand.u32 %s115, 1
        %s215 = scalar_lea.sflag [#allocation5], %s214
        %s216 = sand.u32 %s115, 1
        %s217 = smul.addr %s216, 16
        %s218 = scalar_lea.vmem [#allocation6], %s217
        %s219 = smul.u32 2, %s27
        %p220 = scmp.lt.s32.totalorder %s26, 0
        %s221 = scalar_select %p220, %s26, 0
        %p222 = scmp.lt.s32.totalorder %s28, 0
        %s223 = scalar_select %p222, %s28, 0
        %s224 = sadd.s32 %s223, %s221
        %s225 = smul.addr %s224, 8
        %s226 = scalar_lea.vmem %s1, %s225
        %s227 = smul.u32 2, %s27
        %p228 = scmp.eq.s32.totalorder %s28, 0
        // Predicated region
        $region33: #{tpu_custom_call.1} parent=27 // pred_check
          %p229 = pneg %p228
        $region34: #{tpu_custom_call.1} parent=27 // pred_check_branch
          %231 = sbr.rel (%p229) target = $region36
        $region35: #{tpu_custom_call.1} parent=27 // pred_region
          %232 = vst [vmem:[#allocation2] sm:$0xff] 0.0
          %233 = vst [vmem:[#allocation2 + $0x8] sm:$0xff] 0.0
        $region36: #{tpu_custom_call.1} parent=27 // pred_fallthru
          _
        %v234 = vld [vmem:[#allocation2] sm:$0xff]
        %v235 = vld [vmem:[#allocation2 + $0x8] sm:$0xff]
        %v236 = vld [vmem:[%s226] sm:$0xff]
        %v237 = vld [vmem:[%s191] sm:$0xff]
        %v239 = vcombine.high %v237, %v237
        %vm240 = vcmask 31744
        %v242 = vsel %vm240, %v236, 0
        %vm244 = vcmask 1043456
        %v245 = vsel %vm244, %v237, 0
        %v247 = vsel %vm244, %v239, 0
        %249 = vmatprep.subr.mxu0 %v247
        %250 = vmatpush1.msra.mxu0 %v245
        %251 = vmatprep.subr.mxu0 0.0
        %252 = vmatpush1.msra.mxu0 0.0
        %253 = vmatprep.subr.mxu0 0.0
        %254 = vmatpush1.msra.mxu0 0.0
        %255 = vmatprep.subr.mxu0 0.0
        %256 = vmatpush1.msra.mxu0 0.0
        %257 = vmatprep.subr.mxu0 0.0
        %258 = vmatpush1.msra.mxu0 0.0
        %259 = vmatprep.subr.mxu0 0.0
        %260 = vmatpush1.msra.mxu0 0.0
        %261 = vmatprep.subr.mxu0 0.0
        %262 = vmatpush1.msra.mxu0 0.0
        %263 = vmatprep.subr.mxu0 0.0
        %264 = vmatpush1.msra.mxu0 0.0
        %265 = vmatprep.subr.mxu0 0.0
        %266 = vmatpush1.msra.mxu0 0.0
        %267 = vmatprep.subr.mxu0 0.0
        %268 = vmatpush1.msra.mxu0 0.0
        %269 = vmatprep.subr.mxu0 0.0
        %270 = vmatpush1.msra.mxu0 0.0
        %271 = vmatprep.subr.mxu0 0.0
        %272 = vmatpush1.msra.mxu0 0.0
        %273 = vmatprep.subr.mxu0 0.0
        %274 = vmatpush1.msra.mxu0 0.0
        %275 = vmatprep.subr.mxu0 0.0
        %276 = vmatpush1.msra.mxu0 0.0
        %277 = vmatprep.subr.mxu0 0.0
        %278 = vmatpush1.msra.mxu0 0.0
        %279 = vmatprep.subr.mxu0 0.0
        %280 = vmatpush1.msra.mxu0 0.0
        %281 = vmatprep.subr.mxu0 0.0
        %282 = vmatpush1.msra.mxu0 0.0
        %283 = vmatprep.subr.mxu0 0.0
        %284 = vmatpush1.msra.mxu0 0.0
        %285 = vmatprep.subr.mxu0 0.0
        %286 = vmatpush1.msra.mxu0 0.0
        %287 = vmatprep.subr.mxu0 0.0
        %288 = vmatpush1.msra.mxu0 0.0
        %289 = vmatprep.subr.mxu0 0.0
        %290 = vmatpush1.msra.mxu0 0.0
        %291 = vmatprep.subr.mxu0 0.0
        %292 = vmatpush1.msra.mxu0 0.0
        %293 = vmatprep.subr.mxu0 0.0
        %294 = vmatpush1.msra.mxu0 0.0
        %295 = vmatprep.subr.mxu0 0.0
        %296 = vmatpush1.msra.mxu0 0.0
        %297 = vmatprep.subr.mxu0 0.0
        %298 = vmatpush1.msra.mxu0 0.0
        %299 = vmatprep.subr.mxu0 0.0
        %300 = vmatpush1.msra.mxu0 0.0
        %301 = vmatprep.subr.mxu0 0.0
        %302 = vmatpush1.msra.mxu0 0.0
        %303 = vmatprep.subr.mxu0 0.0
        %304 = vmatpush1.msra.mxu0 0.0
        %305 = vmatprep.subr.mxu0 0.0
        %306 = vmatpush1.msra.mxu0 0.0
        %307 = vmatprep.subr.mxu0 0.0
        %308 = vmatpush1.msra.mxu0 0.0
        %309 = vmatprep.subr.mxu0 0.0
        %310 = vmatpush1.msra.mxu0 0.0
        %311 = vmatprep.subr.mxu0 0.0
        %312 = vmatpush1.msra.mxu0 0.0
        %313 = vmatprep.mubr.f32.mxu0 0.0
        %314 = vmatmul.mubr.f32.gmra.mrb[0].mxu0 %v242
        %v315 = vpop.f32.mrb[0].mxu0
        %v316 = vadd.f32 0.0, %v315
        %v317 = vpop.f32.mrb[0].mxu0
        %v318 = vadd.f32 0.0, %v317
        %319 = vdwg.mxu0
        %v320 = vadd.f32 %v234, %v316
        %v321 = vadd.f32 %v235, %v318
        %322 = vst [vmem:[#allocation2] sm:$0xff] %v320
        %323 = vst [vmem:[#allocation2 + $0x8] sm:$0xff] %v321
        // Predicated region
        $region37: #{tpu_custom_call.1} parent=27 // pred_check
          %p324 = pneg %p228
        $region38: #{tpu_custom_call.1} parent=27 // pred_check_branch
          %326 = sbr.rel (%p324) target = $region40
        $region39: #{tpu_custom_call.1} parent=27 // pred_region
          %v327 = vld [vmem:[#allocation2] sm:$0xff]
          %v328 = vld [vmem:[#allocation2 + $0x8] sm:$0xff]
          %329 = vst [vmem:[%s218] sm:$0xff] %v327
          %330 = vst [vmem:[%s218 + $0x8] sm:$0xff] %v328
        $region40: #{tpu_custom_call.1} parent=27 // pred_fallthru
          _
        %s331 = sand.u32 %s115, 1
        %s332 = scalar_lea.sflag [#allocation5], %s331
        %s333 = sand.u32 %s115, 1
        %s334 = smul.addr %s333, 16
        %s335 = scalar_lea.vmem [#allocation6], %s334
        // Predicated region
        $region41: #{tpu_custom_call.1} parent=27 // pred_check
          %p336 = pneg %p125
        $region42: #{tpu_custom_call.1} parent=27 // pred_check_branch
          %338 = sbr.rel (%p336) target = $region44
        $region43: #{tpu_custom_call.1} parent=27 // pred_region
          %s339 = smul.u32 2, %s27
          %s341 = ssub.s32 256, 256
          %342 = vsyncadd %s332, %s341
          %s343 = smul.addr %s26, 2
          %s344 = sadd.s32 %s339, %s343
          %s345 = smul.addr %s25, 2
          %s346 = sadd.s32 %s344, %s345
          %s347 = smul.addr %s346, 128
          %s348 = scalar_lea.hbm %s2, %s347
          %s350 = sshll.u32 %s335, 4
          %s351 = int_to_ptr.vmem [resolvable:$true] %s350
          %353 = dma.vmem_to_hbm [thread:$0]  %s351, 256, %s348, %s332
        $region44: #{tpu_custom_call.1} parent=27 // pred_fallthru
          _
      $region28: #{tpu_custom_call.1} parent=5 // pred_fallthru
        _
      %p354 = scmp.le.s32.totalorder 2, %s14
      // Predicated region
      $region45: #{tpu_custom_call.1} parent=5 // pred_check
        %p355 = pneg %p354
      $region46: #{tpu_custom_call.1} parent=5 // pred_check_branch
        %357 = sbr.rel (%p355) target = $region48
      $region47: #{tpu_custom_call.1} parent=5 // pred_region
        %s358 = ssub.s32 %s14, 2
        // Predicated region
        $region49: #{tpu_custom_call.1} parent=47 // pred_check
          %p359 = pneg %p131
        $region50: #{tpu_custom_call.1} parent=47 // pred_check_branch
          %361 = sbr.rel (%p359) target = $region52
        $region51: #{tpu_custom_call.1} parent=47 // pred_region
          %s362 = sand.u32 %s116, 1
          %s363 = scalar_lea.sflag [#allocation5], %s362
          %s364 = sand.u32 %s116, 1
          %s365 = smul.addr %s364, 16
          %s366 = scalar_lea.vmem [#allocation6], %s365
          %367 = dma.done %s363, 256
        $region52: #{tpu_custom_call.1} parent=47 // pred_fallthru
          _
      $region48: #{tpu_custom_call.1} parent=5 // pred_fallthru
        _
    $region6: #{tpu_custom_call.1} parent=1 // loop_footer
      %s18 = sadd.s32 1, %s14
    $region7: #{tpu_custom_call.1} parent=1 // loop_footer_branch
      %13 = sbr.rel target = $region3
    $region8: #{tpu_custom_call.1} parent=1 // loop_exit
      _
    %368 = vsyncpa [#allocation4], 1
    %s369 = scalar_lea.sflag [#allocation4], 1
    %370 = vsyncpa %s369, 1
    %371 = vsyncpa [#allocation5], 1
    %s372 = scalar_lea.sflag [#allocation5], 1
    %373 = vsyncpa %s372, 1

</llo_original>
